<compile_context>
chip_gen: v5e
topology: v5e:2x2
jax: 0.10.0
libtpu: 0.0.40
codegen_flags: <defaults>
</compile_context>

<pallas_src>
import jax
import jax.numpy as jnp
from jax.experimental import pallas as pl
from jax.experimental.pallas import tpu as pltpu


# ----------------------------------------------------------------------------
# Pallas kernel: fused  tanh(linear1) -> flatten(t, f) -> tanh(linear2)
# Single invocation (no grid): whole batch in one MXU matmul.
# ----------------------------------------------------------------------------
def dual_head_kernel(xa_ref, xb_ref, w1_ref, b1_ref, w2a_ref, w2b_ref, b2_ref,
                     out_ref):
    # Whole-array blocks, all resident in VMEM:
    #   xa_ref, xb_ref : (B*S, H) bf16   -- each BERT's last_hidden_state, batch-flattened
    #   w1_ref         : (H, F)   bf16    b1_ref : (1, F) f32
    #   w2a_ref        : (L, S, F) bf16  -- W2 columns for concat positions [0, S)
    #   w2b_ref        : (L, S, F) bf16  -- W2 columns for concat positions [S, 2S)
    #   b2_ref         : (1, L)   f32     out_ref: (B, L) f32
    BS = xa_ref.shape[0]
    L, S, F = w2a_ref.shape
    B = BS // S

    # ---- linear1 + tanh: ONE big MXU matmul over (A half ++ B half) ---------
    x = jnp.concatenate([xa_ref[...], xb_ref[...]], axis=0)            # (2*B*S, H) bf16
    h = jnp.tanh(
        jnp.dot(x, w1_ref[...], preferred_element_type=jnp.float32)    # MXU, f32 acc
        + b1_ref[...])                                                  # (2*B*S, F) f32

    ha = h[:BS].reshape(B, S, F)     # A half  -> concatenated positions [0, S)
    hb = h[BS:].reshape(B, S, F)     # B half  -> concatenated positions [S, 2S)

    # ---- flatten(t, f) + linear2 + tanh --------------------------------------
    # out[b, l] = tanh( sum_{t,f} h[b, t, f] * W2[l, t*F + f] + b2[l] )
    # Tiny contraction (B*L*T*F MACs) -> vectorized VPU multiply + lane/sublane
    # reductions in f32 (the MXU would be almost entirely idle at N = L = 2).
    w2a = w2a_ref[...].astype(jnp.float32)                              # (L, S, F), cast once
    w2b = w2b_ref[...].astype(jnp.float32)                              # (L, S, F)
    s = (jnp.sum(ha[:, None, :, :] * w2a[None, :, :, :], axis=-1)       # (B, L, S)
         + jnp.sum(hb[:, None, :, :] * w2b[None, :, :, :], axis=-1))    # (B, L, S)
    logits = jnp.sum(s, axis=-1) + b2_ref[...]                          # (B, L)

    out_ref[...] = jnp.tanh(logits).astype(out_ref.dtype)               # single store


def dual_bert_head(h_a, h_b, w1, b1, w2_flat, b2, *, compute_dtype=jnp.bfloat16):
    """h_a, h_b: (B, S, H) last_hidden_states.  w1: (H, F), b1: (F,),
    w2_flat: (L, T*F) in PyTorch layout (T = 2*S), b2: (L,).  Returns (B, L) f32."""
    B, S, H = h_a.shape
    F = w1.shape[1]
    L = b2.shape[-1]
    T = 2 * S

    # (B, S, H) -> (B*S, H): tile-aligned leading-dim collapse, free.
    xa = h_a.reshape(B * S, H).astype(compute_dtype)
    xb = h_b.reshape(B * S, H).astype(compute_dtype)
    w1c = w1.astype(compute_dtype)

    # Lane-dense W2: w2_ltf[l, t, f] == w2_flat[l, t*F + f] (pure reshape, no
    # transpose), pre-split into A-half / B-half of the position axis so the
    # kernel never slices or gathers the weight.
    w2_ltf = w2_flat.reshape(L, T, F).astype(compute_dtype)
    w2a = w2_ltf[:, :S, :]
    w2b = w2_ltf[:, S:, :]

    b1_2d = b1.reshape(1, F).astype(jnp.float32)
    b2_2d = b2.reshape(1, L).astype(jnp.float32)

    vmem = pl.BlockSpec(memory_space=pltpu.MemorySpace.VMEM)
    out = pl.pallas_call(
        dual_head_kernel,
        out_shape=jax.ShapeDtypeStruct((B, L), jnp.float32),
        in_specs=[vmem] * 7,
        out_specs=vmem,
    )(xa, xb, w1c, b1_2d, w2a, w2b, b2_2d)
    return out


# ----------------------------------------------------------------------------
# Deterministic stand-in "BERT" encoder (plain JAX glue).
# ----------------------------------------------------------------------------
def stub_bert(input_ids, emb_table, w_enc):
    # input_ids: (B, S) int32 -> last_hidden_state (B, S, H)
    emb = jnp.take(emb_table, input_ids, axis=0)              # (B, S, H)
    return jnp.tanh(jnp.einsum("bsh,hk->bsk", emb, w_enc))


def dual_bert_for_classification(x_a_ids, x_b_ids, params):
    h_a = stub_bert(x_a_ids, params["emb_a"], params["enc_a"])   # (B, S, H)
    h_b = stub_bert(x_b_ids, params["emb_b"], params["enc_b"])   # (B, S, H)
    # torch.cat(dim=1) is realized inside the kernel (part A -> t in [0, S),
    # part B -> t in [S, 2S)); nothing is concatenated/transposed in HBM.
    return dual_bert_head(h_a, h_b, params["w1"], params["b1"],
                          params["w2"], params["b2"])


def reference_forward(x_a_ids, x_b_ids, params):
    """Pure-JAX reference mirroring the PyTorch math (and the kernel's bf16
    quantization of x / W1 / W2, with f32 accumulation)."""
    q = lambda a: a.astype(jnp.bfloat16).astype(jnp.float32)
    h_a = stub_bert(x_a_ids, params["emb_a"], params["enc_a"])
    h_b = stub_bert(x_b_ids, params["emb_b"], params["enc_b"])
    x = jnp.concatenate([q(h_a), q(h_b)], axis=1)                 # (B, T, H)
    h = jnp.tanh(jnp.einsum("bth,hf->btf", x, q(params["w1"])) + params["b1"])
    flat = h.reshape(x.shape[0], -1)                              # (B, T*F), flatten (t, f)
    return jnp.tanh(flat @ q(params["w2"]).T + params["b2"])      # (B, L)


if __name__ == "__main__":
    # Small shapes consistent with the module structure:
    #   hidden H, linear1 H->F, total seq T = S_a + S_b, linear2 (T*F) -> L
    B, S, H, F, L = 4, 8, 128, 256, 2
    T = 2 * S
    VOCAB = 64

    key = jax.random.PRNGKey(0)
    keys = jax.random.split(key, 10)

    params = {
        "emb_a": jax.random.normal(keys[0], (VOCAB, H), jnp.float32) * 0.1,
        "emb_b": jax.random.normal(keys[1], (VOCAB, H), jnp.float32) * 0.1,
        "enc_a": jax.random.normal(keys[2], (H, H), jnp.float32) * 0.05,
        "enc_b": jax.random.normal(keys[3], (H, H), jnp.float32) * 0.05,
        # linear1: PyTorch weight (F, H) stored transposed as (H, F)
        "w1": jax.random.normal(keys[4], (H, F), jnp.float32) * 0.05,
        "b1": jax.random.normal(keys[5], (F,), jnp.float32) * 0.05,
        # linear2: PyTorch-native layout (L, T*F)
        "w2": jax.random.normal(keys[6], (L, T * F), jnp.float32) * 0.02,
        "b2": jax.random.normal(keys[7], (L,), jnp.float32) * 0.02,
    }

    x_a_ids = jax.random.randint(keys[8], (B, S), 0, VOCAB, dtype=jnp.int32)
    x_b_ids = jax.random.randint(keys[9], (B, S), 0, VOCAB, dtype=jnp.int32)

    fwd = jax.jit(dual_bert_for_classification)
    out = jax.block_until_ready(fwd(x_a_ids, x_b_ids, params))

    ref = reference_forward(x_a_ids, x_b_ids, params)
    assert out.shape == (B, L)
    max_err = float(jnp.max(jnp.abs(out - ref)))
    assert jnp.allclose(out, ref, atol=1e-2, rtol=1e-2), f"mismatch vs reference (max err {max_err})"

    print("KERNEL_OK")
</pallas_src>

<mosaic_0001>
module attributes {stable_mosaic.version = 11 : i64} {
  func.func @dual_head_kernel(%arg0: memref<32x128xbf16, #tpu.memory_space<vmem>>, %arg1: memref<32x128xbf16, #tpu.memory_space<vmem>>, %arg2: memref<128x256xbf16, #tpu.memory_space<vmem>>, %arg3: memref<1x256xf32, #tpu.memory_space<vmem>>, %arg4: memref<2x8x256xbf16, #tpu.memory_space<vmem>>, %arg5: memref<2x8x256xbf16, #tpu.memory_space<vmem>>, %arg6: memref<1x2xf32, #tpu.memory_space<vmem>>, %arg7: memref<4x2xf32, #tpu.memory_space<vmem>>) attributes {dimension_semantics = [], scalar_prefetch = 0 : i64, scratch_operands = 0 : i64, tpu.core_type = #tpu.core_type<tc>} {
    %c0 = arith.constant 0 : index
    %c0_0 = arith.constant 0 : index
    %0 = vector.load %arg0[%c0, %c0_0] : memref<32x128xbf16, #tpu.memory_space<vmem>>, vector<32x128xbf16>
    %c0_1 = arith.constant 0 : index
    %c0_2 = arith.constant 0 : index
    %1 = vector.load %arg1[%c0_1, %c0_2] : memref<32x128xbf16, #tpu.memory_space<vmem>>, vector<32x128xbf16>
    %2 = tpu.concatenate %0, %1 in 0 : vector<32x128xbf16>, vector<32x128xbf16> -> vector<64x128xbf16>
    %c0_3 = arith.constant 0 : index
    %c0_4 = arith.constant 0 : index
    %3 = vector.load %arg2[%c0_3, %c0_4] : memref<128x256xbf16, #tpu.memory_space<vmem>>, vector<128x256xbf16>
    %cst = arith.constant dense<0.000000e+00> : vector<64x256xf32>
    %4 = tpu.matmul %2, %3, %cst {dimension_numbers = #tpu.dot_dimension_numbers<[1], [0], [0], [1], [0, 0, 1, 1], [], []>} : vector<64x128xbf16>, vector<128x256xbf16>, vector<64x256xf32> -> vector<64x256xf32>
    %c0_5 = arith.constant 0 : index
    %c0_6 = arith.constant 0 : index
    %5 = vector.load %arg3[%c0_5, %c0_6] : memref<1x256xf32, #tpu.memory_space<vmem>>, vector<1x256xf32>
    %6 = vector.broadcast %5 : vector<1x256xf32> to vector<64x256xf32>
    %7 = arith.addf %4, %6 : vector<64x256xf32>
    %8 = math.tanh %7 : vector<64x256xf32>
    %9 = vector.extract_strided_slice %8 {offsets = [0, 0], sizes = [32, 256], strides = [1, 1]} : vector<64x256xf32> to vector<32x256xf32>
    %10 = vector.shape_cast %9 : vector<32x256xf32> to vector<4x8x256xf32>
    %11 = vector.extract_strided_slice %8 {offsets = [32, 0], sizes = [32, 256], strides = [1, 1]} : vector<64x256xf32> to vector<32x256xf32>
    %12 = vector.shape_cast %11 : vector<32x256xf32> to vector<4x8x256xf32>
    %c0_7 = arith.constant 0 : index
    %c0_8 = arith.constant 0 : index
    %c0_9 = arith.constant 0 : index
    %13 = vector.load %arg4[%c0_7, %c0_8, %c0_9] : memref<2x8x256xbf16, #tpu.memory_space<vmem>>, vector<2x8x256xbf16>
    %14 = arith.extf %13 : vector<2x8x256xbf16> to vector<2x8x256xf32>
    %c0_10 = arith.constant 0 : index
    %c0_11 = arith.constant 0 : index
    %c0_12 = arith.constant 0 : index
    %15 = vector.load %arg5[%c0_10, %c0_11, %c0_12] : memref<2x8x256xbf16, #tpu.memory_space<vmem>>, vector<2x8x256xbf16>
    %16 = arith.extf %15 : vector<2x8x256xbf16> to vector<2x8x256xf32>
    %17 = vector.shape_cast %10 : vector<4x8x256xf32> to vector<4x1x8x256xf32>
    %18 = vector.shape_cast %14 : vector<2x8x256xf32> to vector<1x2x8x256xf32>
    %19 = vector.broadcast %17 : vector<4x1x8x256xf32> to vector<4x2x8x256xf32>
    %20 = vector.broadcast %18 : vector<1x2x8x256xf32> to vector<4x2x8x256xf32>
    %21 = arith.mulf %19, %20 : vector<4x2x8x256xf32>
    %cst_13 = arith.constant dense<0.000000e+00> : vector<4x2x8xf32>
    %22 = vector.multi_reduction <add>, %21, %cst_13 [3] : vector<4x2x8x256xf32> to vector<4x2x8xf32>
    %23 = vector.shape_cast %12 : vector<4x8x256xf32> to vector<4x1x8x256xf32>
    %24 = vector.shape_cast %16 : vector<2x8x256xf32> to vector<1x2x8x256xf32>
    %25 = vector.broadcast %23 : vector<4x1x8x256xf32> to vector<4x2x8x256xf32>
    %26 = vector.broadcast %24 : vector<1x2x8x256xf32> to vector<4x2x8x256xf32>
    %27 = arith.mulf %25, %26 : vector<4x2x8x256xf32>
    %cst_14 = arith.constant dense<0.000000e+00> : vector<4x2x8xf32>
    %28 = vector.multi_reduction <add>, %27, %cst_14 [3] : vector<4x2x8x256xf32> to vector<4x2x8xf32>
    %29 = arith.addf %22, %28 : vector<4x2x8xf32>
    %cst_15 = arith.constant dense<0.000000e+00> : vector<4x2xf32>
    %30 = vector.multi_reduction <add>, %29, %cst_15 [2] : vector<4x2x8xf32> to vector<4x2xf32>
    %c0_16 = arith.constant 0 : index
    %c0_17 = arith.constant 0 : index
    %31 = vector.load %arg6[%c0_16, %c0_17] : memref<1x2xf32, #tpu.memory_space<vmem>>, vector<1x2xf32>
    %32 = vector.broadcast %31 : vector<1x2xf32> to vector<4x2xf32>
    %33 = arith.addf %30, %32 : vector<4x2xf32>
    %34 = math.tanh %33 : vector<4x2xf32>
    %c0_18 = arith.constant 0 : index
    %c0_19 = arith.constant 0 : index
    %35 = vector.load %arg7[%c0_18, %c0_19] : memref<4x2xf32, #tpu.memory_space<vmem>>, vector<4x2xf32>
    tpu.vector_store %arg7[%c0_18, %c0_19], %34 {strides = array<i32>} : memref<4x2xf32, #tpu.memory_space<vmem>>, vector<4x2xf32>,
    return
  }
}

</mosaic_0001>

<llo_original>
// kernel: dual_bert_for_classification.1
$region0: #{dual_bert_for_classification.1}
  #allocation0 [shape = 'u32[]', space=smem, size = 0x4, offset = 0x4, fixed_abs, tag = 'smem constant byte address 0x4 - core index']
  #allocation1 [shape = 'u32[72,128]{1,0:T(1,128)}', space=vmem, size = 0x9000, scoped, tag = 'internal scratch']
  %s0 = inlined_call_operand.vmem [shape: bf16[32,128], index: 0, kind: input, shape index: {}]
  %s1 = inlined_call_operand.vmem [shape: bf16[32,128], index: 1, kind: input, shape index: {}]
  %s2 = inlined_call_operand.vmem [shape: bf16[128,256], index: 2, kind: input, shape index: {}]
  %s3 = inlined_call_operand.vmem [shape: f32[1,256], index: 3, kind: input, shape index: {}]
  %s4 = inlined_call_operand.vmem [shape: bf16[2,8,256], index: 4, kind: input, shape index: {}]
  %s5 = inlined_call_operand.vmem [shape: bf16[2,8,256], index: 5, kind: input, shape index: {}]
  %s6 = inlined_call_operand.vmem [shape: f32[1,2], index: 6, kind: input, shape index: {}]
  %s7 = inlined_call_operand.vmem [shape: f32[4,2], index: 7, kind: output, shape index: {}]
  %s8 = sld [smem:[#allocation0]]
  $region38: #{dual_bert_for_classification.1} parent=0
    _
  %s10 = ssub.s32 1, %s8
  %s11 = scalar_select 0, %s10, %s8
  // Predicated region
  $region2: #{dual_bert_for_classification.1} parent=0 // pred_check
    _
  $region3: #{dual_bert_for_classification.1} parent=0 // pred_check_branch
    %13 = sbr.rel (0) target = $region5
  $region4: #{dual_bert_for_classification.1} parent=0 // pred_region
    _
  $region5: #{dual_bert_for_classification.1} parent=0 // pred_fallthru
    _
  // Predicated region
  $region6: #{dual_bert_for_classification.1} parent=0 // pred_check
    _
  $region7: #{dual_bert_for_classification.1} parent=0 // pred_check_branch
    %15 = sbr.rel (0) target = $region9
  $region8: #{dual_bert_for_classification.1} parent=0 // pred_region
    _
  $region9: #{dual_bert_for_classification.1} parent=0 // pred_fallthru
    _
  // Predicated region
  $region10: #{dual_bert_for_classification.1} parent=0 // pred_check
    _
  $region11: #{dual_bert_for_classification.1} parent=0 // pred_check_branch
    %17 = sbr.rel (0) target = $region13
  $region12: #{dual_bert_for_classification.1} parent=0 // pred_region
    _
  $region13: #{dual_bert_for_classification.1} parent=0 // pred_fallthru
    _
  // Predicated region
  $region14: #{dual_bert_for_classification.1} parent=0 // pred_check
    _
  $region15: #{dual_bert_for_classification.1} parent=0 // pred_check_branch
    %19 = sbr.rel (0) target = $region17
  $region16: #{dual_bert_for_classification.1} parent=0 // pred_region
    _
  $region17: #{dual_bert_for_classification.1} parent=0 // pred_fallthru
    _
  // Predicated region
  $region18: #{dual_bert_for_classification.1} parent=0 // pred_check
    _
  $region19: #{dual_bert_for_classification.1} parent=0 // pred_check_branch
    %21 = sbr.rel (0) target = $region21
  $region20: #{dual_bert_for_classification.1} parent=0 // pred_region
    _
  $region21: #{dual_bert_for_classification.1} parent=0 // pred_fallthru
    _
  // Predicated region
  $region22: #{dual_bert_for_classification.1} parent=0 // pred_check
    _
  $region23: #{dual_bert_for_classification.1} parent=0 // pred_check_branch
    %23 = sbr.rel (0) target = $region25
  $region24: #{dual_bert_for_classification.1} parent=0 // pred_region
    _
  $region25: #{dual_bert_for_classification.1} parent=0 // pred_fallthru
    _
  // Predicated region
  $region26: #{dual_bert_for_classification.1} parent=0 // pred_check
    _
  $region27: #{dual_bert_for_classification.1} parent=0 // pred_check_branch
    %25 = sbr.rel (0) target = $region29
  $region28: #{dual_bert_for_classification.1} parent=0 // pred_region
    _
  $region29: #{dual_bert_for_classification.1} parent=0 // pred_fallthru
    _
  %v26 = vld [vmem:[%s0] sm:$0xf]
  %v27 = vld [vmem:[%s0 + $0x4] sm:$0xf]
  %v28 = vld [vmem:[%s0 + $0x8] sm:$0xf]
  %v29 = vld [vmem:[%s0 + $0xc] sm:$0xf]
  %v30 = vld [vmem:[%s1] sm:$0xf]
  %v31 = vld [vmem:[%s1 + $0x4] sm:$0xf]
  %v32 = vld [vmem:[%s1 + $0x8] sm:$0xf]
  %v33 = vld [vmem:[%s1 + $0xc] sm:$0xf]
  %v38 = vunpack.c.l.b16 %v26
  %v39 = vunpack.c.l.b16 %v27
  %v40 = vunpack.c.l.b16 %v28
  %v41 = vunpack.c.l.b16 %v29
  %v42 = vpack.c.b16 %v39, %v38
  %v43 = vpack.c.b16 %v41, %v40
  %v50 = vunpack.c.l.b16 %v30
  %v51 = vunpack.c.l.b16 %v31
  %v52 = vunpack.c.l.b16 %v32
  %v53 = vunpack.c.l.b16 %v33
  %v54 = vpack.c.b16 %v51, %v50
  %v55 = vpack.c.b16 %v53, %v52
  %v58 = vld [vmem:[%s2] sm:$0xff]
  %v59 = vld [vmem:[%s2 + $0x8] sm:$0xff]
  %v60 = vld [vmem:[%s2 + $0x10] sm:$0xff]
  %v61 = vld [vmem:[%s2 + $0x18] sm:$0xff]
  %v62 = vld [vmem:[%s2 + $0x20] sm:$0xff]
  %v63 = vld [vmem:[%s2 + $0x28] sm:$0xff]
  %v64 = vld [vmem:[%s2 + $0x30] sm:$0xff]
  %v65 = vld [vmem:[%s2 + $0x38] sm:$0xff]
  %v66 = vld [vmem:[%s2 + $0x40] sm:$0xff]
  %v67 = vld [vmem:[%s2 + $0x48] sm:$0xff]
  %v68 = vld [vmem:[%s2 + $0x50] sm:$0xff]
  %v69 = vld [vmem:[%s2 + $0x58] sm:$0xff]
  %v70 = vld [vmem:[%s2 + $0x60] sm:$0xff]
  %v71 = vld [vmem:[%s2 + $0x68] sm:$0xff]
  %v72 = vld [vmem:[%s2 + $0x70] sm:$0xff]
  %v73 = vld [vmem:[%s2 + $0x78] sm:$0xff]
  %v74 = vld [vmem:[%s3] sm:$0x3]
  %v76 = vperm.slane %v74, 0
  %v77 = vperm.slane %v74, 1
  %v96 = vunpack.c.l.b16 %v58
  %v97 = vunpack.c.h.b16 %v58
  %v98 = vunpack.c.l.b16 %v59
  %v99 = vunpack.c.h.b16 %v59
  %v100 = vunpack.c.l.b16 %v60
  %v101 = vunpack.c.h.b16 %v60
  %v102 = vunpack.c.l.b16 %v61
  %v103 = vunpack.c.h.b16 %v61
  %v104 = vunpack.c.l.b16 %v62
  %v105 = vunpack.c.h.b16 %v62
  %v106 = vunpack.c.l.b16 %v63
  %v107 = vunpack.c.h.b16 %v63
  %v108 = vunpack.c.l.b16 %v64
  %v109 = vunpack.c.h.b16 %v64
  %v110 = vunpack.c.l.b16 %v65
  %v111 = vunpack.c.h.b16 %v65
  %v112 = vunpack.c.l.b16 %v66
  %v113 = vunpack.c.h.b16 %v66
  %v114 = vunpack.c.l.b16 %v67
  %v115 = vunpack.c.h.b16 %v67
  %v116 = vunpack.c.l.b16 %v68
  %v117 = vunpack.c.h.b16 %v68
  %v118 = vunpack.c.l.b16 %v69
  %v119 = vunpack.c.h.b16 %v69
  %v120 = vunpack.c.l.b16 %v70
  %v121 = vunpack.c.h.b16 %v70
  %v122 = vunpack.c.l.b16 %v71
  %v123 = vunpack.c.h.b16 %v71
  %v124 = vunpack.c.l.b16 %v72
  %v125 = vunpack.c.h.b16 %v72
  %v126 = vunpack.c.l.b16 %v73
  %v127 = vunpack.c.h.b16 %v73
  %v128 = vpack.c.b16 %v98, %v96
  %v129 = vpack.c.b16 %v99, %v97
  %v130 = vpack.c.b16 %v102, %v100
  %v131 = vpack.c.b16 %v103, %v101
  %v132 = vpack.c.b16 %v106, %v104
  %v133 = vpack.c.b16 %v107, %v105
  %v134 = vpack.c.b16 %v110, %v108
  %v135 = vpack.c.b16 %v111, %v109
  %v136 = vpack.c.b16 %v114, %v112
  %v137 = vpack.c.b16 %v115, %v113
  %v138 = vpack.c.b16 %v118, %v116
  %v139 = vpack.c.b16 %v119, %v117
  %v140 = vpack.c.b16 %v122, %v120
  %v141 = vpack.c.b16 %v123, %v121
  %v142 = vpack.c.b16 %v126, %v124
  %v143 = vpack.c.b16 %v127, %v125
  %160 = vmatpush.bf16.msra.mxu0 %v142
  %161 = vmatpush.bf16.msra.mxu0 %v140
  %162 = vmatpush.bf16.msra.mxu0 %v138
  %163 = vmatpush.bf16.msra.mxu0 %v136
  %164 = vmatpush.bf16.msra.mxu0 %v134
  %165 = vmatpush.bf16.msra.mxu0 %v132
  %166 = vmatpush.bf16.msra.mxu0 %v130
  %167 = vmatpush.bf16.msra.mxu0 %v128
  %168 = vmatmul.bf16.gmra.mxu0 %v42
  %v169 = vpop.f32.mrf.mxu0
  %v170 = vadd.f32 %v76, %v169
  %v171 = vpop.f32.mrf.mxu0
  %v172 = vadd.f32 %v76, %v171
  %173 = vmatmul.bf16.gmra.mxu0 %v43
  %v174 = vpop.f32.mrf.mxu0
  %v175 = vadd.f32 %v76, %v174
  %v176 = vpop.f32.mrf.mxu0
  %v177 = vadd.f32 %v76, %v176
  %178 = vmatmul.bf16.gmra.mxu0 %v54
  %v179 = vpop.f32.mrf.mxu0
  %v180 = vadd.f32 %v76, %v179
  %v181 = vpop.f32.mrf.mxu0
  %v182 = vadd.f32 %v76, %v181
  %183 = vmatmul.bf16.gmra.mxu0 %v55
  %v184 = vpop.f32.mrf.mxu0
  %v185 = vadd.f32 %v76, %v184
  %v186 = vpop.f32.mrf.mxu0
  %v187 = vadd.f32 %v76, %v186
  %188 = vdwg.mxu0
  %189 = vmatpush.bf16.msra.mxu0 %v143
  %190 = vmatpush.bf16.msra.mxu0 %v141
  %191 = vmatpush.bf16.msra.mxu0 %v139
  %192 = vmatpush.bf16.msra.mxu0 %v137
  %193 = vmatpush.bf16.msra.mxu0 %v135
  %194 = vmatpush.bf16.msra.mxu0 %v133
  %195 = vmatpush.bf16.msra.mxu0 %v131
  %196 = vmatpush.bf16.msra.mxu0 %v129
  %197 = vmatmul.bf16.gmra.mxu0 %v42
  %v198 = vpop.f32.mrf.mxu0
  %v199 = vadd.f32 %v77, %v198
  %v200 = vpop.f32.mrf.mxu0
  %v201 = vadd.f32 %v77, %v200
  %202 = vmatmul.bf16.gmra.mxu0 %v43
  %v203 = vpop.f32.mrf.mxu0
  %v204 = vadd.f32 %v77, %v203
  %v205 = vpop.f32.mrf.mxu0
  %v206 = vadd.f32 %v77, %v205
  %207 = vmatmul.bf16.gmra.mxu0 %v54
  %v208 = vpop.f32.mrf.mxu0
  %v209 = vadd.f32 %v77, %v208
  %v210 = vpop.f32.mrf.mxu0
  %v211 = vadd.f32 %v77, %v210
  %212 = vmatmul.bf16.gmra.mxu0 %v55
  %v213 = vpop.f32.mrf.mxu0
  %v214 = vadd.f32 %v77, %v213
  %v215 = vpop.f32.mrf.mxu0
  %v216 = vadd.f32 %v77, %v215
  %217 = vdwg.mxu0
  %v218 = vtanh.pop %v170
  %v219 = vtanh.pop %v199
  %v220 = vtanh.pop %v172
  %v221 = vtanh.pop %v201
  %v222 = vtanh.pop %v175
  %v223 = vtanh.pop %v204
  %v224 = vtanh.pop %v177
  %v225 = vtanh.pop %v206
  %v226 = vtanh.pop %v180
  %v227 = vtanh.pop %v209
  %v228 = vtanh.pop %v182
  %v229 = vtanh.pop %v211
  %v230 = vtanh.pop %v185
  %v231 = vtanh.pop %v214
  %v232 = vtanh.pop %v187
  %v233 = vtanh.pop %v216
  %v234 = vld [vmem:[%s4] sm:$0xff]
  %v235 = vld [vmem:[%s4 + $0x8] sm:$0xff]
  %v236 = vunpack.c.l.bf16 %v234
  %v237 = vunpack.c.h.bf16 %v234
  %v238 = vunpack.c.l.bf16 %v235
  %v239 = vunpack.c.h.bf16 %v235
  %v240 = vld [vmem:[%s5] sm:$0xff]
  %v241 = vld [vmem:[%s5 + $0x8] sm:$0xff]
  %v242 = vunpack.c.l.bf16 %v240
  %v243 = vunpack.c.h.bf16 %v240
  %v244 = vunpack.c.l.bf16 %v241
  %v245 = vunpack.c.h.bf16 %v241
  %v246 = vmul.f32 %v218, %v236
  %v247 = vmul.f32 %v219, %v237
  %v248 = vmul.f32 %v218, %v238
  %v249 = vmul.f32 %v219, %v239
  %v250 = vmul.f32 %v220, %v236
  %v251 = vmul.f32 %v221, %v237
  %v252 = vmul.f32 %v220, %v238
  %v253 = vmul.f32 %v221, %v239
  %v254 = vmul.f32 %v222, %v236
  %v255 = vmul.f32 %v223, %v237
  %v256 = vmul.f32 %v222, %v238
  %v257 = vmul.f32 %v223, %v239
  %v258 = vmul.f32 %v224, %v236
  %v259 = vmul.f32 %v225, %v237
  %v260 = vmul.f32 %v224, %v238
  %v261 = vmul.f32 %v225, %v239
  %v262 = vadd.f32 %v246, %v247
  %263 = vadd.xlane.f32.xlu0 %v262
  %v264 = vpop.xlane.xlu0 %263
  %v265 = vadd.f32 %v248, %v249
  %266 = vadd.xlane.f32.xlu0 %v265
  %v267 = vpop.xlane.xlu0 %266
  %v268 = vadd.f32 %v250, %v251
  %269 = vadd.xlane.f32.xlu0 %v268
  %v270 = vpop.xlane.xlu0 %269
  %v271 = vadd.f32 %v252, %v253
  %272 = vadd.xlane.f32.xlu0 %v271
  %v273 = vpop.xlane.xlu0 %272
  %v274 = vadd.f32 %v254, %v255
  %275 = vadd.xlane.f32.xlu0 %v274
  %v276 = vpop.xlane.xlu0 %275
  %v277 = vadd.f32 %v256, %v257
  %278 = vadd.xlane.f32.xlu0 %v277
  %v279 = vpop.xlane.xlu0 %278
  %v280 = vadd.f32 %v258, %v259
  %281 = vadd.xlane.f32.xlu0 %v280
  %v282 = vpop.xlane.xlu0 %281
  %v283 = vadd.f32 %v260, %v261
  %284 = vadd.xlane.f32.xlu0 %v283
  %v285 = vpop.xlane.xlu0 %284
  %v286 = vmul.f32 %v226, %v242
  %v287 = vmul.f32 %v227, %v243
  %v288 = vmul.f32 %v226, %v244
  %v289 = vmul.f32 %v227, %v245
  %v290 = vmul.f32 %v228, %v242
  %v291 = vmul.f32 %v229, %v243
  %v292 = vmul.f32 %v228, %v244
  %v293 = vmul.f32 %v229, %v245
  %v294 = vmul.f32 %v230, %v242
  %v295 = vmul.f32 %v231, %v243
  %v296 = vmul.f32 %v230, %v244
  %v297 = vmul.f32 %v231, %v245
  %v298 = vmul.f32 %v232, %v242
  %v299 = vmul.f32 %v233, %v243
  %v300 = vmul.f32 %v232, %v244
  %v301 = vmul.f32 %v233, %v245
  %v302 = vadd.f32 %v286, %v287
  %303 = vadd.xlane.f32.xlu0 %v302
  %v304 = vpop.xlane.xlu0 %303
  %v305 = vadd.f32 %v288, %v289
  %306 = vadd.xlane.f32.xlu0 %v305
  %v307 = vpop.xlane.xlu0 %306
  %v308 = vadd.f32 %v290, %v291
  %309 = vadd.xlane.f32.xlu0 %v308
  %v310 = vpop.xlane.xlu0 %309
  %v311 = vadd.f32 %v292, %v293
  %312 = vadd.xlane.f32.xlu0 %v311
  %v313 = vpop.xlane.xlu0 %312
  %v314 = vadd.f32 %v294, %v295
  %315 = vadd.xlane.f32.xlu0 %v314
  %v316 = vpop.xlane.xlu0 %315
  %v317 = vadd.f32 %v296, %v297
  %318 = vadd.xlane.f32.xlu0 %v317
  %v319 = vpop.xlane.xlu0 %318
  %v320 = vadd.f32 %v298, %v299
  %321 = vadd.xlane.f32.xlu0 %v320
  %v322 = vpop.xlane.xlu0 %321
  %v323 = vadd.f32 %v300, %v301
  %324 = vadd.xlane.f32.xlu0 %v323
  %v325 = vpop.xlane.xlu0 %324
  %v326 = vadd.f32 %v264, %v304
  %v327 = vadd.f32 %v267, %v307
  %v328 = vadd.f32 %v270, %v310
  %v329 = vadd.f32 %v273, %v313
  %v330 = vadd.f32 %v276, %v316
  %v331 = vadd.f32 %v279, %v319
  %v332 = vadd.f32 %v282, %v322
  %v333 = vadd.f32 %v285, %v325
  %v342 = vlaneseq
  %v343 = vand.u32 %v342, 127
  %v344 = vperm.slane %v326, %v343
  %v345 = vperm.slane %v327, %v343
  %v346 = vperm.slane %v328, %v343
  %v347 = vperm.slane %v329, %v343
  %v348 = vperm.slane %v330, %v343
  %v349 = vperm.slane %v331, %v343
  %v350 = vperm.slane %v332, %v343
  %v351 = vperm.slane %v333, %v343
  %vm352 = vcmask 1041409
  %v353 = vsel %vm352, %v345, %v344
  %v354 = vsel %vm352, %v347, %v346
  %v355 = vsel %vm352, %v349, %v348
  %v356 = vsel %vm352, %v351, %v350
  %vm361 = vcmask 58368
  %v362 = vsel %vm361, %v353, 0.0
  %363 = vadd.xlane.f32.xlu0 %v362
  %v364 = vpop.xlane.xlu0 %363
  %v365 = vsel %vm361, %v354, 0.0
  %366 = vadd.xlane.f32.xlu0 %v365
  %v367 = vpop.xlane.xlu0 %366
  %v368 = vsel %vm361, %v355, 0.0
  %369 = vadd.xlane.f32.xlu0 %v368
  %v370 = vpop.xlane.xlu0 %369
  %v371 = vsel %vm361, %v356, 0.0
  %372 = vadd.xlane.f32.xlu0 %v371
  %v373 = vpop.xlane.xlu0 %372
  %v374 = vld [vmem:[%s6] sm:$0x1]
  %v376 = vperm.slane %v374, 0
  %v377 = vlaneseq
  %v378 = vshrl.u32 %v377, 7
  %380 = vset.pattern.permute.xlu0 %v378
  %381 = vperm.xlu0 %380, %v376
  %v382 = vpop.permute.xlu0 %381
  %v384 = vadd.f32 %v364, %v382
  %v385 = vadd.f32 %v367, %v382
  %v386 = vadd.f32 %v370, %v382
  %v387 = vadd.f32 %v373, %v382
  %v388 = vtanh.pop %v384
  %v389 = vtanh.pop %v385
  %v390 = vtanh.pop %v386
  %v391 = vtanh.pop %v387
  %396 = vset.pattern.permute.xlu0 0
  %397 = vperm.xlu0 %396, %v388
  %v398 = vpop.permute.xlu0 %397
  %399 = vset.pattern.permute.xlu0 0
  %400 = vperm.xlu0 %399, %v389
  %v401 = vpop.permute.xlu0 %400
  %402 = vset.pattern.permute.xlu0 0
  %403 = vperm.xlu0 %402, %v390
  %v404 = vpop.permute.xlu0 %403
  %405 = vset.pattern.permute.xlu0 0
  %406 = vperm.xlu0 %405, %v391
  %v407 = vpop.permute.xlu0 %406
  %v408 = vperm.slane %v398, %v343
  %v409 = vperm.slane %v401, %v343
  %v410 = vperm.slane %v404, %v343
  %v411 = vperm.slane %v407, %v343
  %v412 = vsel %vm352, %v409, %v408
  %vm413 = vcmask 1042434
  %v414 = vsel %vm413, %v410, %v412
  %vm415 = vcmask 1043459
  %v416 = vsel %vm415, %v411, %v414
  %vm418 = vcmask 11264
  %419 = vst.msk [vmem:[%s7] sm:$0xf] %vm418, %v416
  // Predicated region
  $region30: #{dual_bert_for_classification.1} parent=0 // pred_check
    _
  $region31: #{dual_bert_for_classification.1} parent=0 // pred_check_branch
    %421 = sbr.rel (0) target = $region33
  $region32: #{dual_bert_for_classification.1} parent=0 // pred_region
    _
  $region33: #{dual_bert_for_classification.1} parent=0 // pred_fallthru
    _
  // Predicated region
  $region34: #{dual_bert_for_classification.1} parent=0 // pred_check
    _
  $region35: #{dual_bert_for_classification.1} parent=0 // pred_check_branch
    %423 = sbr.rel (0) target = $region37
  $region36: #{dual_bert_for_classification.1} parent=0 // pred_region
    _
  $region37: #{dual_bert_for_classification.1} parent=0 // pred_fallthru
    _

</llo_original>
